<compile_context>
chip_gen: v5e
topology: v5e:2x2
jax: 0.10.0
libtpu: 0.0.40
codegen_flags: <defaults>
</compile_context>

<pallas_src>
import functools

import jax
import jax.numpy as jnp
from jax import lax
from jax.experimental import pallas as pl
from jax.experimental.pallas import tpu as pltpu


_LOG_EPS = 1e-9
_VMEM_LIMIT_BYTES = 32 * 1024 * 1024  # fits scoped VMEM on v5e / v6e / v7x


def _cdiv(a, b):
    return -(-a // b)


def _static_pow(x, p):
    """x**p for a static exponent; integer p via repeated multiply (VPU only)."""
    pf = float(p)
    if pf.is_integer() and 0 <= int(pf) <= 64:
        n = int(pf)
        if n == 0:
            return jnp.ones_like(x)
        result = None
        base = x
        while n:
            if n & 1:
                result = base if result is None else result * base
            n >>= 1
            if n:
                base = base * base
        return result
    # TODO(synk): fractional gamma/beta fall back to jnp.power (EUP exp+log) and can
    # produce NaN for slightly-negative bases, exactly like the PyTorch reference.
    return jnp.power(x, pf)


def _focal_terms(pred, gt, gamma, beta):
    """loss_negative + loss_positive (sign not yet flipped), element-wise in f32."""
    one = jnp.float32(1.0)
    d = jnp.abs(gt - one)
    pos = d < 0.05
    neg = d > 0.05
    if float(gamma) > 0.0 and float(beta) > 0.0:
        # Select form: one log, no bool->f32 casts, no mask multiplies.  Identical to
        # the reference for gamma,beta > 0; the knife-edge |gt-1| == 0.05 case stays 0.
        one_minus_pred = one - pred
        pos_coeff = _static_pow(one_minus_pred, gamma)
        neg_coeff = _static_pow(one - gt, beta) * _static_pow(pred, gamma)
        coeff = jnp.where(pos, pos_coeff,
                          jnp.where(neg, neg_coeff, jnp.float32(0.0)))
        log_arg = jnp.where(pos, pred, one_minus_pred)
        return coeff * jnp.log(log_arg + _LOG_EPS)
    # Literal masked formulation (handles degenerate gamma == 0 / beta == 0 exactly).
    posf = pos.astype(jnp.float32)
    negf = neg.astype(jnp.float32)
    loss_pos = _static_pow((one - pred) * posf, gamma) * jnp.log(pred * posf + _LOG_EPS)
    loss_neg = (_static_pow((one - gt) * negf, beta)
                * _static_pow(pred * negf, gamma)
                * jnp.log((one - pred) * negf + _LOG_EPS))
    return loss_neg + loss_pos


def _elem_kernel(pred_ref, gt_ref, out_ref, *, gamma, beta):
    pred = pred_ref[...].astype(jnp.float32)
    gt = gt_ref[...].astype(jnp.float32)
    out_ref[...] = (-_focal_terms(pred, gt, gamma, beta)).astype(out_ref.dtype)


def _partial_sum_kernel(pred_ref, gt_ref, out_ref, *, gamma, beta, rows, block_rows):
    """Per-block partial sums folded to an (8, L) lane-dense slab (VPU adds only)."""
    pred = pred_ref[...].astype(jnp.float32)
    gt = gt_ref[...].astype(jnp.float32)
    t = _focal_terms(pred, gt, gamma, beta)
    if rows % block_rows != 0:
        # Ragged last block: rows past `rows` hold undefined data; select them to 0.
        base = pl.program_id(0) * block_rows
        row_id = base + lax.broadcasted_iota(jnp.int32, t.shape, 0)
        t = jnp.where(row_id < rows, t, jnp.float32(0.0))
    if block_rows % 8 == 0:
        # Fold to one vreg row-group with pure VPU adds (no cross-lane XLU reduce),
        # then a lane-dense (8, L) store; the wrapper finishes the reduction.
        partial = t[0:8, :]
        for r in range(1, block_rows // 8):
            partial = partial + t[r * 8:(r + 1) * 8, :]
    else:
        # Tiny input: single block with block_rows == rows < 8.
        partial = t
    out_ref[...] = partial


def _choose_lanes(total, lane_tile):
    """Largest lane width that divides `total` exactly (prefer multiples of 128)."""
    cap = min(lane_tile, total)
    for k in range(cap // 128, 0, -1):
        if total % (128 * k) == 0:
            return 128 * k
    # TODO(synk): no multiple of 128 divides `total`; fall back to the largest divisor
    # (lane-padded layout but still zero-copy).  Pathological (prime) sizes degrade.
    for lanes in range(cap, 0, -1):
        if total % lanes == 0:
            return lanes
    return total


def focal_loss_v2_pallas(pred, gt, gamma=2, beta=4, reduction="mean", mask=None,
                         lane_tile=2048, row_tile=256):
    """Pallas forward of FocalLossV2.  pred/gt: same-shaped float heatmaps.

    `mask` is accepted for signature parity with the PyTorch module but is unused
    there (and here).  bf16 pred/gt are supported (kernel upcasts to f32 internally).
    """
    del mask
    assert pred.shape == gt.shape, "pred and gt must have the same shape"
    orig_shape = pred.shape
    out_dtype = pred.dtype
    total = pred.size

    # Zero-copy lane-dense 2D layout (rows, L): L divides `total`, so no jnp.pad and
    # no output slice are ever materialized.
    L = _choose_lanes(total, lane_tile)
    rows = total // L
    if rows >= 8:
        R = min(row_tile, (rows // 8) * 8)  # multiple of 8; ~2 MiB f32 input blocks
    else:
        R = rows
    num_blocks = _cdiv(rows, R)

    pred2 = pred.reshape(rows, L)
    gt2 = gt.reshape(rows, L)

    in_specs = [
        pl.BlockSpec((R, L), lambda i: (i, 0)),
        pl.BlockSpec((R, L), lambda i: (i, 0)),
    ]
    grid = (num_blocks,)
    cparams = pltpu.CompilerParams(
        dimension_semantics=("parallel",),
        vmem_limit_bytes=_VMEM_LIMIT_BYTES,
    )

    if reduction == "mean":
        pr = 8 if R % 8 == 0 else R
        kernel = functools.partial(_partial_sum_kernel, gamma=gamma, beta=beta,
                                   rows=rows, block_rows=R)
        partials = pl.pallas_call(
            kernel,
            out_shape=jax.ShapeDtypeStruct((num_blocks * pr, L), jnp.float32),
            grid_spec=pltpu.PrefetchScalarGridSpec(
                num_scalar_prefetch=0,
                grid=grid,
                in_specs=in_specs,
                out_specs=pl.BlockSpec((pr, L), lambda i: (i, 0)),
            ),
            compiler_params=cparams,
        )(pred2, gt2)
        total_sum = jnp.sum(partials, dtype=jnp.float32)
        return (-total_sum / jnp.float32(total)).astype(out_dtype)

    # reduction != 'mean' -> element-wise negated loss (matches the PyTorch module).
    kernel = functools.partial(_elem_kernel, gamma=gamma, beta=beta)
    out2 = pl.pallas_call(
        kernel,
        out_shape=jax.ShapeDtypeStruct((rows, L), out_dtype),
        grid_spec=pltpu.PrefetchScalarGridSpec(
            num_scalar_prefetch=0,
            grid=grid,
            in_specs=in_specs,
            out_specs=pl.BlockSpec((R, L), lambda i: (i, 0)),
        ),
        compiler_params=cparams,
    )(pred2, gt2)
    return out2.reshape(orig_shape)


def _focal_loss_v2_ref(pred, gt, gamma=2, beta=4, reduction="mean"):
    """Pure-JAX reference mirroring the PyTorch FocalLossV2.forward."""
    posf = (jnp.abs(gt - 1.0) < 0.05).astype(pred.dtype)
    negf = (jnp.abs(gt - 1.0) > 0.05).astype(pred.dtype)
    loss_pos = ((1.0 - pred) * posf) ** gamma * jnp.log(pred * posf + 1e-9)
    loss_neg = (((1.0 - gt) * negf) ** beta * (pred * negf) ** gamma
                * jnp.log((1.0 - pred) * negf + 1e-9))
    if reduction == "mean":
        return -jnp.mean(loss_neg + loss_pos)
    return -(loss_neg + loss_pos)


def _make_inputs(key, shape):
    k1, k2 = jax.random.split(key)
    pred = jax.nn.sigmoid(jax.random.normal(k1, shape, dtype=jnp.float32))
    u = jax.random.uniform(k2, shape, dtype=jnp.float32)
    gt = jnp.where(u > 0.9, jnp.float32(1.0), u * 0.8)
    return pred, gt


if __name__ == "__main__":
    gamma, beta = 2, 4  # module defaults
    key = jax.random.PRNGKey(0)
    k_small, k_big = jax.random.split(key)

    # Primary small test (single block, rows < 8 path).
    N, C, H, W = 2, 4, 16, 16
    pred, gt = _make_inputs(k_small, (N, C, H, W))

    loss_mean = focal_loss_v2_pallas(pred, gt, gamma=gamma, beta=beta, reduction="mean")
    loss_mean = jax.block_until_ready(loss_mean)
    ref_mean = _focal_loss_v2_ref(pred, gt, gamma, beta, "mean")
    assert loss_mean.shape == ()
    assert jnp.allclose(loss_mean, ref_mean, atol=1e-5, rtol=1e-5), (loss_mean, ref_mean)

    loss_none = focal_loss_v2_pallas(pred, gt, gamma=gamma, beta=beta, reduction="none")
    loss_none = jax.block_until_ready(loss_none)
    ref_none = _focal_loss_v2_ref(pred, gt, gamma, beta, "none")
    assert loss_none.shape == (N, C, H, W)
    assert jnp.allclose(loss_none, ref_none, atol=1e-5, rtol=1e-5)

    # Secondary test exercising multi-block grid + ragged last block + 8-row folding
    # (T = 40960 -> L = 2048, rows = 20, R = 16, 2 blocks, last block 4 valid rows).
    pred2, gt2 = _make_inputs(k_big, (2, 4, 40, 128))

    lm2 = jax.block_until_ready(
        focal_loss_v2_pallas(pred2, gt2, gamma=gamma, beta=beta, reduction="mean"))
    rm2 = _focal_loss_v2_ref(pred2, gt2, gamma, beta, "mean")
    assert jnp.allclose(lm2, rm2, atol=1e-5, rtol=1e-5), (lm2, rm2)

    ln2 = jax.block_until_ready(
        focal_loss_v2_pallas(pred2, gt2, gamma=gamma, beta=beta, reduction="none"))
    rn2 = _focal_loss_v2_ref(pred2, gt2, gamma, beta, "none")
    assert ln2.shape == (2, 4, 40, 128)
    assert jnp.allclose(ln2, rn2, atol=1e-5, rtol=1e-5)

    print("KERNEL_OK")
</pallas_src>

<mosaic_0001>
module attributes {stable_mosaic.version = 11 : i64} {
  func.func @_partial_sum_kernel(%arg0: i32, %arg1: memref<1x2048xf32, #tpu.memory_space<vmem>>, %arg2: memref<1x2048xf32, #tpu.memory_space<vmem>>, %arg3: memref<1x2048xf32, #tpu.memory_space<vmem>>) attributes {dimension_semantics = [#tpu.dimension_semantics<parallel>], iteration_bounds = array<i64: 1>, scalar_prefetch = 0 : i64, scratch_operands = 0 : i64, tpu.core_type = #tpu.core_type<tc>, window_params = [{transform_indices = @transform_0, window_bounds = array<i64: 1, 2048>}, {transform_indices = @transform_1, window_bounds = array<i64: 1, 2048>}, {transform_indices = @transform_2, window_bounds = array<i64: 1, 2048>}]} {
    %c0 = arith.constant 0 : index
    %c0_0 = arith.constant 0 : index
    %0 = vector.load %arg1[%c0, %c0_0] : memref<1x2048xf32, #tpu.memory_space<vmem>>, vector<1x2048xf32>
    %c0_1 = arith.constant 0 : index
    %c0_2 = arith.constant 0 : index
    %1 = vector.load %arg2[%c0_1, %c0_2] : memref<1x2048xf32, #tpu.memory_space<vmem>>, vector<1x2048xf32>
    %cst = arith.constant 1.000000e+00 : f32
    %2 = vector.broadcast %cst : f32 to vector<1x2048xf32>
    %3 = arith.subf %1, %2 : vector<1x2048xf32>
    %4 = math.absf %3 : vector<1x2048xf32>
    %cst_3 = arith.constant 5.000000e-02 : f32
    %5 = vector.broadcast %cst_3 : f32 to vector<1x2048xf32>
    %6 = arith.cmpf olt, %4, %5 : vector<1x2048xf32>
    %cst_4 = arith.constant 5.000000e-02 : f32
    %7 = vector.broadcast %cst_4 : f32 to vector<1x2048xf32>
    %8 = arith.cmpf ogt, %4, %7 : vector<1x2048xf32>
    %cst_5 = arith.constant 1.000000e+00 : f32
    %9 = vector.broadcast %cst_5 : f32 to vector<1x2048xf32>
    %10 = arith.subf %9, %0 : vector<1x2048xf32>
    %11 = arith.mulf %10, %10 : vector<1x2048xf32>
    %cst_6 = arith.constant 1.000000e+00 : f32
    %12 = vector.broadcast %cst_6 : f32 to vector<1x2048xf32>
    %13 = arith.subf %12, %1 : vector<1x2048xf32>
    %14 = arith.mulf %13, %13 : vector<1x2048xf32>
    %15 = arith.mulf %14, %14 : vector<1x2048xf32>
    %16 = arith.mulf %0, %0 : vector<1x2048xf32>
    %17 = arith.mulf %15, %16 : vector<1x2048xf32>
    %cst_7 = arith.constant 0.000000e+00 : f32
    %18 = vector.broadcast %cst_7 : f32 to vector<1x2048xf32>
    %19 = arith.select %8, %17, %18 : vector<1x2048xi1>, vector<1x2048xf32>
    %20 = arith.select %6, %11, %19 : vector<1x2048xi1>, vector<1x2048xf32>
    %21 = arith.select %6, %0, %10 : vector<1x2048xi1>, vector<1x2048xf32>
    %cst_8 = arith.constant 9.99999971E-10 : f32
    %22 = vector.broadcast %cst_8 : f32 to vector<1x2048xf32>
    %23 = arith.addf %21, %22 : vector<1x2048xf32>
    %24 = math.log %23 : vector<1x2048xf32>
    %25 = arith.mulf %20, %24 : vector<1x2048xf32>
    %c0_9 = arith.constant 0 : index
    %c0_10 = arith.constant 0 : index
    %26 = vector.load %arg3[%c0_9, %c0_10] : memref<1x2048xf32, #tpu.memory_space<vmem>>, vector<1x2048xf32>
    tpu.vector_store %arg3[%c0_9, %c0_10], %25 {strides = array<i32>} : memref<1x2048xf32, #tpu.memory_space<vmem>>, vector<1x2048xf32>,
    return
  }
  func.func @transform_0(%arg0: i32) -> (i32, i32) {
    %c0_i32 = arith.constant 0 : i32
    %c0_i32_0 = arith.constant 0 : i32
    return %arg0, %c0_i32 : i32, i32
  }
  func.func @transform_1(%arg0: i32) -> (i32, i32) {
    %c0_i32 = arith.constant 0 : i32
    %c0_i32_0 = arith.constant 0 : i32
    return %arg0, %c0_i32 : i32, i32
  }
  func.func @transform_2(%arg0: i32) -> (i32, i32) {
    %c0_i32 = arith.constant 0 : i32
    %c0_i32_0 = arith.constant 0 : i32
    return %arg0, %c0_i32 : i32, i32
  }
}

</mosaic_0001>

<llo_original>
// kernel: tpu_custom_call.1
$region0: #{tpu_custom_call.1}
  #allocation0 [shape = 'u32[]', space=smem, size = 0x4, offset = 0x4, fixed_abs, tag = 'smem constant byte address 0x4 - core index']
  #allocation1 [shape = 'u32[72,128]{1,0:T(1,128)}', space=vmem, size = 0x9000, scoped, tag = 'internal scratch']
  %s0 = inlined_call_operand.hbm [shape: f32[1,2048], index: 0, kind: input, shape index: {}]
  %s1 = inlined_call_operand.hbm [shape: f32[1,2048], index: 1, kind: input, shape index: {}]
  %s2 = inlined_call_operand.hbm [shape: f32[1,2048], index: 2, kind: output, shape index: {}]
  %s3 = sld [smem:[#allocation0]]
  $region26: #{tpu_custom_call.1} parent=0
    _
  %s5 = ssub.s32 1, %s3
  %s6 = scalar_select 0, %s5, %s3
  $region1: #{tpu_custom_call.1} parent=0
    #allocation2 [shape = 'u8[8192]{0}', space=vmem, size = 0x2000, scoped, tag = 'input window, operand 0, single buffered']
    #allocation3 [shape = 's32[1]{0}', space=sflag, size = 0x4, scoped, tag = 'scoped memory for tpu_custom_call.1']
    #allocation4 [shape = 's32[1]{0}', space=sflag, size = 0x4, scoped, tag = 'scoped memory for tpu_custom_call.1']
    #allocation5 [shape = 'u8[8192]{0}', space=vmem, size = 0x2000, scoped, tag = 'input window, operand 1, single buffered']
    #allocation6 [shape = 's32[1]{0}', space=sflag, size = 0x4, scoped, tag = 'scoped memory for tpu_custom_call.1']
    #allocation7 [shape = 'u8[8192]{0}', space=vmem, size = 0x2000, scoped, tag = 'output window, operand 0, single buffered']
    %7 = vsyncpa [#allocation3], 0
    %8 = vsyncpa [#allocation6], 0
    %9 = vsyncpa [#allocation4], 0
    // Predicated region
    $region2: #{tpu_custom_call.1} parent=1 // pred_check
      _
    $region3: #{tpu_custom_call.1} parent=1 // pred_check_branch
      %11 = sbr.rel (0) target = $region5
    $region4: #{tpu_custom_call.1} parent=1 // pred_region
      %13 = vsyncadd [#allocation3], 0
      %s15 = sshll.u32 %s0, 4
      %s16 = int_to_ptr.hbm [resolvable:$true] %s15
      %s17 = sshll.u32 [#allocation2], 4
      %s18 = int_to_ptr.vmem [resolvable:$true] %s17
      %20 = dma.hbm_to_vmem [thread:$0]  %s16, 256, %s18, [#allocation3]
    $region5: #{tpu_custom_call.1} parent=1 // pred_fallthru
      _
    // Predicated region
    $region6: #{tpu_custom_call.1} parent=1 // pred_check
      _
    $region7: #{tpu_custom_call.1} parent=1 // pred_check_branch
      %22 = sbr.rel (0) target = $region9
    $region8: #{tpu_custom_call.1} parent=1 // pred_region
      %24 = vsyncadd [#allocation6], 0
      %s26 = sshll.u32 %s1, 4
      %s27 = int_to_ptr.hbm [resolvable:$true] %s26
      %s28 = sshll.u32 [#allocation5], 4
      %s29 = int_to_ptr.vmem [resolvable:$true] %s28
      %31 = dma.hbm_to_vmem [thread:$0]  %s27, 256, %s29, [#allocation6]
    $region9: #{tpu_custom_call.1} parent=1 // pred_fallthru
      _
    // Predicated region
    $region10: #{tpu_custom_call.1} parent=1 // pred_check
      _
    $region11: #{tpu_custom_call.1} parent=1 // pred_check_branch
      %33 = sbr.rel (0) target = $region13
    $region12: #{tpu_custom_call.1} parent=1 // pred_region
      %35 = dma.done [#allocation3], 256
    $region13: #{tpu_custom_call.1} parent=1 // pred_fallthru
      _
    // Predicated region
    $region14: #{tpu_custom_call.1} parent=1 // pred_check
      _
    $region15: #{tpu_custom_call.1} parent=1 // pred_check_branch
      %37 = sbr.rel (0) target = $region17
    $region16: #{tpu_custom_call.1} parent=1 // pred_region
      %39 = dma.done [#allocation6], 256
    $region17: #{tpu_custom_call.1} parent=1 // pred_fallthru
      _
    %v40 = vld [vmem:[#allocation2] sm:$0xff]
    %v41 = vld [vmem:[#allocation2 + $0x8] sm:$0xff]
    %v42 = vld [vmem:[#allocation5] sm:$0xff]
    %v43 = vld [vmem:[#allocation5 + $0x8] sm:$0xff]
    %v44 = vsub.f32 %v42, 1.0
    %v45 = vsub.f32 %v43, 1.0
    %v46 = vand.u32 2147483647, %v44
    %v47 = vand.u32 2147483647, %v45
    %vm48 = vcmp.lt.f32.partialorder %v46, 0.05
    %vm49 = vcmp.lt.f32.partialorder %v47, 0.05
    %vm50 = vcmp.gt.f32.partialorder %v46, 0.05
    %vm51 = vcmp.gt.f32.partialorder %v47, 0.05
    %v52 = vsub.f32 1.0, %v40
    %v53 = vsub.f32 1.0, %v41
    %v54 = vmul.f32 %v52, %v52
    %v55 = vmul.f32 %v53, %v53
    %v56 = vsub.f32 1.0, %v42
    %v57 = vsub.f32 1.0, %v43
    %v58 = vmul.f32 %v56, %v56
    %v59 = vmul.f32 %v57, %v57
    %v60 = vmul.f32 %v58, %v58
    %v61 = vmul.f32 %v59, %v59
    %v62 = vmul.f32 %v40, %v40
    %v63 = vmul.f32 %v41, %v41
    %v64 = vmul.f32 %v60, %v62
    %v65 = vmul.f32 %v61, %v63
    %v66 = vsel %vm50, %v64, 0.0
    %v67 = vsel %vm51, %v65, 0.0
    %v68 = vsel %vm48, %v54, %v66
    %v69 = vsel %vm49, %v55, %v67
    %v70 = vsel %vm48, %v40, %v52
    %v71 = vsel %vm49, %v41, %v53
    %v72 = vadd.f32 %v70, 1e-09
    %v73 = vadd.f32 %v71, 1e-09
    %v74 = vlog2.pop %v72
    %v75 = vmul.f32 %v74, 0.6931472
    %v76 = vlog2.pop %v73
    %v77 = vmul.f32 %v76, 0.6931472
    %v78 = vmul.f32 %v68, %v75
    %v79 = vmul.f32 %v69, %v77
    %80 = vst [vmem:[#allocation7] sm:$0xff] %v78
    %81 = vst [vmem:[#allocation7 + $0x8] sm:$0xff] %v79
    // Predicated region
    $region18: #{tpu_custom_call.1} parent=1 // pred_check
      _
    $region19: #{tpu_custom_call.1} parent=1 // pred_check_branch
      %83 = sbr.rel (0) target = $region21
    $region20: #{tpu_custom_call.1} parent=1 // pred_region
      %85 = vsyncadd [#allocation4], 0
      %s87 = sshll.u32 [#allocation7], 4
      %s88 = int_to_ptr.vmem [resolvable:$true] %s87
      %s89 = sshll.u32 %s2, 4
      %s90 = int_to_ptr.hbm [resolvable:$true] %s89
      %92 = dma.vmem_to_hbm [thread:$0]  %s88, 256, %s90, [#allocation4]
    $region21: #{tpu_custom_call.1} parent=1 // pred_fallthru
      _
    // Predicated region
    $region22: #{tpu_custom_call.1} parent=1 // pred_check
      _
    $region23: #{tpu_custom_call.1} parent=1 // pred_check_branch
      %94 = sbr.rel (0) target = $region25
    $region24: #{tpu_custom_call.1} parent=1 // pred_region
      %96 = dma.done [#allocation4], 256
    $region25: #{tpu_custom_call.1} parent=1 // pred_fallthru
      _
    %97 = vsyncpa [#allocation3], 1
    %98 = vsyncpa [#allocation6], 1
    %99 = vsyncpa [#allocation4], 1

</llo_original>
